<compile_context>
chip_gen: v7x
topology: tpu7x:2x2x1
jax: 0.10.0
libtpu: 0.0.40
codegen_flags: <defaults>
</compile_context>

<pallas_src>
import functools

import jax
import jax.numpy as jnp
from jax.experimental import pallas as pl
from jax.experimental.pallas import tpu as pltpu


def _round_up(x, m):
    return ((x + m - 1) // m) * m


# ----------------------------------------------------------------------------
# Kernel: one (batch-block, K-tile) grid step.
# ----------------------------------------------------------------------------
def _gcn_kernel(text_ref, adj_ref, w_ref, b_ref, out_ref, acc_ref, denom_ref,
                *, f_out, use_bf16_mxu):
    # text_ref : (TB, KT, F_in_pad)   rows of `text` for this K tile
    # adj_ref  : (TB, N, KT)          columns of `adj` for this K tile
    # w_ref    : (F_in_pad, F_pad)    resident zero-padded weights
    # b_ref    : (1, F_pad)           resident zero-padded bias
    # out_ref  : (TB, N, F_pad)       VMEM-resident across the K axis
    # acc_ref  : (TB, N, F_pad) f32   accumulator for adj @ hidden
    # denom_ref: (TB, N, 1)     f32   row-sum accumulator (only used when
    #                                 F_pad == F_out, i.e. no spare MXU lane)
    k = pl.program_id(1)
    nk = pl.num_programs(1)
    tb, kt, f_in_pad = text_ref.shape
    f_pad = w_ref.shape[1]
    mxu_denom = f_pad > f_out   # spare padded output lane -> row-sum via MXU

    @pl.when(k == 0)
    def _init():
        acc_ref[...] = jnp.zeros_like(acc_ref)
        if not mxu_denom:
            denom_ref[...] = jnp.zeros_like(denom_ref)

    # ---- hidden tile = text_tile @ W (batch*K folded into the MXU M dim) ----
    # Value-level reshape of the loaded tile; valid because the block spans the
    # full (TB, KT, F_in_pad) extent of this grid step.
    text2d = text_ref[...].reshape(tb * kt, f_in_pad)
    w = w_ref[...]
    if use_bf16_mxu:
        text2d = text2d.astype(jnp.bfloat16)
        w = w.astype(jnp.bfloat16)
    hidden = jnp.dot(text2d, w, preferred_element_type=jnp.float32)
    hidden = hidden.reshape(tb, kt, f_pad)

    if mxu_denom:
        # Write 1.0 into padding column F_out of hidden: the adj @ hidden
        # matmul below then also produces the adj row-sums (denominator) on the
        # MXU for free (W's padding columns are exactly zero, so this column of
        # hidden was exactly zero before the overwrite).
        col = jax.lax.broadcasted_iota(jnp.int32, (tb, kt, f_pad), 2)
        hidden = jnp.where(col == f_out, 1.0, hidden)

    adj = adj_ref[...]
    if not mxu_denom:
        # Fallback: no spare lane -> accumulate the row-sums directly.
        denom_ref[...] += jnp.sum(adj, axis=2, keepdims=True)

    hid_mxu = hidden
    if use_bf16_mxu:
        adj = adj.astype(jnp.bfloat16)
        hid_mxu = hidden.astype(jnp.bfloat16)

    # ---- accumulate adj_tile @ hidden_tile (f32 accumulator) ----------------
    acc_ref[...] += jnp.einsum("bnk,bkf->bnf", adj, hid_mxu,
                               preferred_element_type=jnp.float32)

    # ---- epilogue on the last K tile ----------------------------------------
    @pl.when(k == nk - 1)
    def _finalize():
        acc = acc_ref[...]
        if mxu_denom:
            # Extract the row-sum column (padding lane F_out) with a masked
            # reduce; runs once per batch block, negligible vs. the matmuls.
            lane = jax.lax.broadcasted_iota(jnp.int32, acc.shape, 2)
            denom = jnp.sum(jnp.where(lane == f_out, acc, 0.0),
                            axis=2, keepdims=True) + 1.0
        else:
            denom = denom_ref[...] + 1.0
        inv = pl.reciprocal(denom, approx=True)      # EUP vrcp (free slot)
        inv = inv * (2.0 - denom * inv)              # one Newton step -> ~f32
        out_ref[...] = (acc * inv + b_ref[...]).astype(out_ref.dtype)


# ----------------------------------------------------------------------------
# Tile / VMEM-budget selection.
# ----------------------------------------------------------------------------
def _vmem_budget_bytes():
    cap = 64 * 1024 * 1024                 # conservative default = v7x per-TC
    try:
        info = pltpu.get_tpu_info()
        cap = int(getattr(info, "vmem_capacity_bytes", cap))
    except Exception:
        pass
    return int(cap * 3 // 4)               # headroom for Mosaic-internal scratch


def _vmem_estimate_bytes(tb, kt, n, f_in_pad, f_pad):
    dbl = 2  # BlockSpec double buffering
    return 4 * (dbl * tb * kt * f_in_pad   # text blocks
                + dbl * tb * n * kt        # adj blocks
                + dbl * f_in_pad * f_pad   # resident weight (conservative x2)
                + dbl * tb * n * f_pad     # out blocks
                + tb * n * f_pad           # acc scratch
                + 2 * tb * kt * f_pad      # hidden temporary
                + tb * n * 128)            # denom scratch (lane-padded)


def _choose_tiles(b, n, f_in_pad, f_pad, budget_bytes, batch_block, k_tile):
    # Batch block: default to >= 2 blocks (when B >= 2) so the "parallel" grid
    # axis has work to shard across v7x's two TensorCores.  Must divide B.
    tb = max(1, pl.cdiv(b, 2)) if batch_block is None else max(1, min(batch_block, b))
    while b % tb:
        tb -= 1

    # K tile is the last dim of the adj block -> multiple of 128 or == N.
    if k_tile is not None:
        assert n % k_tile == 0 and (k_tile == n or k_tile % 128 == 0), \
            "k_tile must divide N and be a multiple of 128 (or equal N)"
        cands = [k_tile]
    elif n % 128 == 0:
        cands = sorted({k for k in (n, 4096, 2048, 1024, 512, 256, 128)
                        if k <= n and n % k == 0}, reverse=True)
    else:
        cands = [n]

    while True:
        for kt in cands:
            if _vmem_estimate_bytes(tb, kt, n, f_in_pad, f_pad) <= budget_bytes:
                return tb, kt
        if tb == 1:
            # TODO(synk): huge-N regime also needs tiling of the N output rows.
            return 1, cands[-1]
        tb = max(1, tb // 2)
        while b % tb:
            tb -= 1


# ----------------------------------------------------------------------------
# Wrapper.
# ----------------------------------------------------------------------------
def graph_convolution(text, adj, weight, bias=None, *, batch_block=None,
                      k_tile=None, use_bf16_mxu=False):
    """Pallas GCN forward: ((adj @ (text @ W)) / (rowsum(adj)+1)) + bias."""
    B, N, F_in = text.shape
    F_out = weight.shape[1]

    # Lane-dense padding of both feature dims (numerically exact, zero pad).
    F_pad = _round_up(max(F_out, 1), 128)
    F_in_pad = _round_up(max(F_in, 1), 128)

    text_p = text if F_in_pad == F_in else jnp.pad(
        text, ((0, 0), (0, 0), (0, F_in_pad - F_in)))
    weight_p = weight if (F_in_pad == F_in and F_pad == F_out) else jnp.pad(
        weight, ((0, F_in_pad - F_in), (0, F_pad - F_out)))
    if bias is None:
        bias_p = jnp.zeros((1, F_pad), jnp.float32)
    else:
        bias_p = jnp.pad(bias.astype(jnp.float32),
                         (0, F_pad - F_out)).reshape(1, F_pad)

    budget = _vmem_budget_bytes()
    TB, KT = _choose_tiles(B, N, F_in_pad, F_pad, budget, batch_block, k_tile)
    grid = (B // TB, N // KT)

    kernel = functools.partial(_gcn_kernel, f_out=F_out,
                               use_bf16_mxu=use_bf16_mxu)

    flops = 2 * B * N * F_in_pad * F_pad + 2 * B * N * N * F_pad
    bytes_accessed = 4 * (B * N * F_in_pad + B * N * N + F_in_pad * F_pad
                          + B * N * F_pad)

    out_padded = pl.pallas_call(
        kernel,
        out_shape=jax.ShapeDtypeStruct((B, N, F_pad), jnp.float32),
        grid_spec=pltpu.PrefetchScalarGridSpec(
            num_scalar_prefetch=0,
            grid=grid,
            in_specs=[
                pl.BlockSpec((TB, KT, F_in_pad), lambda b, k: (b, k, 0)),
                pl.BlockSpec((TB, N, KT), lambda b, k: (b, 0, k)),
                pl.BlockSpec((F_in_pad, F_pad), lambda b, k: (0, 0)),  # resident
                pl.BlockSpec((1, F_pad), lambda b, k: (0, 0)),         # resident
            ],
            out_specs=pl.BlockSpec((TB, N, F_pad), lambda b, k: (b, 0, 0)),
            scratch_shapes=[
                pltpu.VMEM((TB, N, F_pad), jnp.float32),  # adj@hidden accumulator
                pltpu.VMEM((TB, N, 1), jnp.float32),      # row-sum accumulator
            ],
        ),
        compiler_params=pltpu.CompilerParams(
            dimension_semantics=("parallel", "arbitrary"),
            vmem_limit_bytes=budget,
        ),
        cost_estimate=pl.CostEstimate(flops=flops, transcendentals=B * N,
                                      bytes_accessed=bytes_accessed),
    )(text_p, adj, weight_p, bias_p)

    return out_padded[..., :F_out] if F_pad != F_out else out_padded


def graph_convolution_ref(text, adj, weight, bias=None):
    hidden = jnp.einsum("bnf,fo->bno", text, weight)
    denom = jnp.sum(adj, axis=2, keepdims=True) + 1.0
    out = jnp.einsum("bnm,bmo->bno", adj, hidden) / denom
    if bias is not None:
        out = out + bias
    return out


if __name__ == "__main__":
    def run_case(case_id, B, N, F_in, F_out, *, with_bias=True, k_tile=None,
                 batch_block=None):
        key = jax.random.fold_in(jax.random.PRNGKey(0), case_id)
        k_text, k_adj, k_w, k_b = jax.random.split(key, 4)
        text = jax.random.normal(k_text, (B, N, F_in), dtype=jnp.float32)
        adj = jax.random.uniform(k_adj, (B, N, N), dtype=jnp.float32)
        weight = jax.random.normal(k_w, (F_in, F_out), dtype=jnp.float32) * 0.1
        bias = (jax.random.normal(k_b, (F_out,), dtype=jnp.float32) * 0.1
                if with_bias else None)

        out = graph_convolution(text, adj, weight, bias,
                                batch_block=batch_block, k_tile=k_tile)
        out = jax.block_until_ready(out)
        ref = graph_convolution_ref(text, adj, weight, bias)
        assert out.shape == (B, N, F_out)
        assert jnp.allclose(out, ref, atol=1e-4, rtol=1e-4), \
            f"mismatch vs reference (B={B}, N={N}, F_in={F_in}, F_out={F_out})"

    # Base small-shape case consistent with the module's forward.
    run_case(0, B=2, N=16, F_in=32, F_out=64)
    # Multi-K-tile accumulation + MXU-lane denominator + F_in padding,
    # batch split into two grid blocks (exercises the v7x megacore split).
    run_case(1, B=4, N=256, F_in=96, F_out=192, k_tile=128)
    # F_out already a multiple of 128 (no spare lane) -> row-sum fallback path,
    # and the bias=None branch.
    run_case(2, B=2, N=256, F_in=64, F_out=128, k_tile=128, with_bias=False)

    print("KERNEL_OK")
</pallas_src>

<mosaic_0001>
module attributes {stable_mosaic.version = 11 : i64} {
  func.func @_gcn_kernel(%arg0: i32, %arg1: i32, %arg2: memref<1x16x128xf32, #tpu.memory_space<vmem>>, %arg3: memref<1x16x16xf32, #tpu.memory_space<vmem>>, %arg4: memref<128x128xf32, #tpu.memory_space<vmem>>, %arg5: memref<1x128xf32, #tpu.memory_space<vmem>>, %arg6: memref<1x16x128xf32, #tpu.memory_space<vmem>>, %arg7: memref<1x16x128xf32, #tpu.memory_space<vmem>>, %arg8: memref<1x16x1xf32, #tpu.memory_space<vmem>>) attributes {dimension_semantics = [#tpu.dimension_semantics<parallel>, #tpu.dimension_semantics<arbitrary>], iteration_bounds = array<i64: 2, 1>, scalar_prefetch = 0 : i64, scratch_operands = 2 : i64, tpu.core_type = #tpu.core_type<tc>, window_params = [{transform_indices = @transform_0, window_bounds = array<i64: 1, 16, 128>}, {transform_indices = @transform_1, window_bounds = array<i64: 1, 16, 16>}, {pipeline_mode = #tpu.pipeline_mode<synchronous>, transform_indices = @transform_2, window_bounds = array<i64: 128, 128>}, {pipeline_mode = #tpu.pipeline_mode<synchronous>, transform_indices = @transform_3, window_bounds = array<i64: 1, 128>}, {transform_indices = @transform_4, window_bounds = array<i64: 1, 16, 128>}]} {
    %c0_i32 = arith.constant 0 : i32
    %0 = arith.cmpi eq, %arg1, %c0_i32 : i32
    %1 = arith.extui %0 : i1 to i32
    %c0_i32_0 = arith.constant 0 : i32
    %2 = arith.cmpi ne, %1, %c0_i32_0 : i32
    scf.if %2 {
      %cst_18 = arith.constant 0.000000e+00 : f32
      %21 = vector.broadcast %cst_18 : f32 to vector<1x16x128xf32>
      %c0_19 = arith.constant 0 : index
      %c0_20 = arith.constant 0 : index
      %c0_21 = arith.constant 0 : index
      %22 = vector.load %arg7[%c0_19, %c0_20, %c0_21] : memref<1x16x128xf32, #tpu.memory_space<vmem>>, vector<1x16x128xf32>
      tpu.vector_store %arg7[%c0_19, %c0_20, %c0_21], %21 {strides = array<i32>} : memref<1x16x128xf32, #tpu.memory_space<vmem>>, vector<1x16x128xf32>,
    } else {
    }
    %c0 = arith.constant 0 : index
    %c0_1 = arith.constant 0 : index
    %c0_2 = arith.constant 0 : index
    %3 = vector.load %arg2[%c0, %c0_1, %c0_2] : memref<1x16x128xf32, #tpu.memory_space<vmem>>, vector<1x16x128xf32>
    %4 = vector.shape_cast %3 : vector<1x16x128xf32> to vector<16x128xf32>
    %c0_3 = arith.constant 0 : index
    %c0_4 = arith.constant 0 : index
    %5 = vector.load %arg4[%c0_3, %c0_4] : memref<128x128xf32, #tpu.memory_space<vmem>>, vector<128x128xf32>
    %cst = arith.constant dense<0.000000e+00> : vector<16x128xf32>
    %6 = tpu.matmul %4, %5, %cst {dimension_numbers = #tpu.dot_dimension_numbers<[1], [0], [0], [1], [0, 0, 1, 1], [], []>} : vector<16x128xf32>, vector<128x128xf32>, vector<16x128xf32> -> vector<16x128xf32>
    %7 = vector.shape_cast %6 : vector<16x128xf32> to vector<1x16x128xf32>
    %8 = tpu.iota {dimensions = array<i32: 2>} : vector<1x16x128xi32>
    %c64_i32 = arith.constant 64 : i32
    %9 = vector.broadcast %c64_i32 : i32 to vector<1x16x128xi32>
    %10 = arith.cmpi eq, %8, %9 : vector<1x16x128xi32>
    %cst_5 = arith.constant 1.000000e+00 : f32
    %11 = vector.broadcast %cst_5 : f32 to vector<1x16x128xf32>
    %12 = arith.select %10, %11, %7 : vector<1x16x128xi1>, vector<1x16x128xf32>
    %c0_6 = arith.constant 0 : index
    %c0_7 = arith.constant 0 : index
    %c0_8 = arith.constant 0 : index
    %13 = vector.load %arg3[%c0_6, %c0_7, %c0_8] : memref<1x16x16xf32, #tpu.memory_space<vmem>>, vector<1x16x16xf32>
    %c0_9 = arith.constant 0 : index
    %c0_10 = arith.constant 0 : index
    %c0_11 = arith.constant 0 : index
    %14 = vector.load %arg7[%c0_9, %c0_10, %c0_11] : memref<1x16x128xf32, #tpu.memory_space<vmem>>, vector<1x16x128xf32>
    "tpu.trace_start"() <{level = 10 : i32, message = "bnk,bkf->bnf"}> : () -> ()
    %cst_12 = arith.constant dense<0.000000e+00> : vector<1x16x128xf32>
    %15 = tpu.matmul %13, %12, %cst_12 {dimension_numbers = #tpu.dot_dimension_numbers<[2], [1], [1], [2], [0, 0, 0, 1, 1, 2], [0], [0]>} : vector<1x16x16xf32>, vector<1x16x128xf32>, vector<1x16x128xf32> -> vector<1x16x128xf32>
    "tpu.trace_stop"() : () -> ()
    %16 = arith.addf %14, %15 : vector<1x16x128xf32>
    %c0_13 = arith.constant 0 : index
    %c0_14 = arith.constant 0 : index
    %c0_15 = arith.constant 0 : index
    %17 = vector.load %arg7[%c0_13, %c0_14, %c0_15] : memref<1x16x128xf32, #tpu.memory_space<vmem>>, vector<1x16x128xf32>
    tpu.vector_store %arg7[%c0_13, %c0_14, %c0_15], %16 {strides = array<i32>} : memref<1x16x128xf32, #tpu.memory_space<vmem>>, vector<1x16x128xf32>,
    %c0_i32_16 = arith.constant 0 : i32
    %18 = arith.cmpi eq, %arg1, %c0_i32_16 : i32
    %19 = arith.extui %18 : i1 to i32
    %c0_i32_17 = arith.constant 0 : i32
    %20 = arith.cmpi ne, %19, %c0_i32_17 : i32
    scf.if %20 {
      %c0_18 = arith.constant 0 : index
      %c0_19 = arith.constant 0 : index
      %c0_20 = arith.constant 0 : index
      %21 = vector.load %arg7[%c0_18, %c0_19, %c0_20] : memref<1x16x128xf32, #tpu.memory_space<vmem>>, vector<1x16x128xf32>
      %22 = tpu.iota {dimensions = array<i32: 2>} : vector<1x16x128xi32>
      %c64_i32_21 = arith.constant 64 : i32
      %23 = vector.broadcast %c64_i32_21 : i32 to vector<1x16x128xi32>
      %24 = arith.cmpi eq, %22, %23 : vector<1x16x128xi32>
      %cst_22 = arith.constant 0.000000e+00 : f32
      %25 = vector.broadcast %cst_22 : f32 to vector<1x16x128xf32>
      %26 = arith.select %24, %21, %25 : vector<1x16x128xi1>, vector<1x16x128xf32>
      %cst_23 = arith.constant dense<0.000000e+00> : vector<1x16xf32>
      %27 = vector.multi_reduction <add>, %26, %cst_23 [2] : vector<1x16x128xf32> to vector<1x16xf32>
      %28 = vector.shape_cast %27 : vector<1x16xf32> to vector<1x16x1xf32>
      %cst_24 = arith.constant 1.000000e+00 : f32
      %29 = vector.broadcast %cst_24 : f32 to vector<1x16x1xf32>
      %30 = arith.addf %28, %29 : vector<1x16x1xf32>
      %31 = tpu.reciprocal %30 {approx = true} : vector<1x16x1xf32> -> vector<1x16x1xf32>
      %32 = arith.mulf %30, %31 : vector<1x16x1xf32>
      %cst_25 = arith.constant 2.000000e+00 : f32
      %33 = vector.broadcast %cst_25 : f32 to vector<1x16x1xf32>
      %34 = arith.subf %33, %32 : vector<1x16x1xf32>
      %35 = arith.mulf %31, %34 : vector<1x16x1xf32>
      %36 = vector.broadcast %35 : vector<1x16x1xf32> to vector<1x16x128xf32>
      %37 = arith.mulf %21, %36 : vector<1x16x128xf32>
      %c0_26 = arith.constant 0 : index
      %c0_27 = arith.constant 0 : index
      %38 = vector.load %arg5[%c0_26, %c0_27] : memref<1x128xf32, #tpu.memory_space<vmem>>, vector<1x128xf32>
      %39 = vector.shape_cast %38 : vector<1x128xf32> to vector<1x1x128xf32>
      %40 = vector.broadcast %39 : vector<1x1x128xf32> to vector<1x16x128xf32>
      %41 = arith.addf %37, %40 : vector<1x16x128xf32>
      %c0_28 = arith.constant 0 : index
      %c0_29 = arith.constant 0 : index
      %c0_30 = arith.constant 0 : index
      %42 = vector.load %arg6[%c0_28, %c0_29, %c0_30] : memref<1x16x128xf32, #tpu.memory_space<vmem>>, vector<1x16x128xf32>
      tpu.vector_store %arg6[%c0_28, %c0_29, %c0_30], %41 {strides = array<i32>} : memref<1x16x128xf32, #tpu.memory_space<vmem>>, vector<1x16x128xf32>,
    } else {
    }
    return
  }
  func.func @transform_0(%arg0: i32, %arg1: i32) -> (i32, i32, i32) {
    %c0_i32 = arith.constant 0 : i32
    %c0_i32_0 = arith.constant 0 : i32
    return %arg0, %arg1, %c0_i32 : i32, i32, i32
  }
  func.func @transform_1(%arg0: i32, %arg1: i32) -> (i32, i32, i32) {
    %c0_i32 = arith.constant 0 : i32
    %c0_i32_0 = arith.constant 0 : i32
    return %arg0, %c0_i32, %arg1 : i32, i32, i32
  }
  func.func @transform_2(%arg0: i32, %arg1: i32) -> (i32, i32) {
    %c0_i32 = arith.constant 0 : i32
    %c0_i32_0 = arith.constant 0 : i32
    %c0_i32_1 = arith.constant 0 : i32
    return %c0_i32, %c0_i32_0 : i32, i32
  }
  func.func @transform_3(%arg0: i32, %arg1: i32) -> (i32, i32) {
    %c0_i32 = arith.constant 0 : i32
    %c0_i32_0 = arith.constant 0 : i32
    %c0_i32_1 = arith.constant 0 : i32
    return %c0_i32, %c0_i32_0 : i32, i32
  }
  func.func @transform_4(%arg0: i32, %arg1: i32) -> (i32, i32, i32) {
    %c0_i32 = arith.constant 0 : i32
    %c0_i32_0 = arith.constant 0 : i32
    %c0_i32_1 = arith.constant 0 : i32
    return %arg0, %c0_i32, %c0_i32_0 : i32, i32, i32
  }
}

</mosaic_0001>

<llo_original>
// kernel: tpu_custom_call.1
$region0: #{tpu_custom_call.1}
  #allocation0 [shape = 'u32[]', space=smem, size = 0x4, offset = 0x4, fixed_abs, tag = 'smem constant byte address 0x4 - core index']
  #allocation1 [shape = 'u32[144,128]{1,0:T(1,128)}', space=vmem, size = 0x12000, scoped, tag = 'internal scratch']
  #allocation2 [shape = 'f32[1,16,128]{2,1,0:T(8,128)}', space=vmem, size = 0x2000, scoped, tag = 'scratch operand']
  #allocation3 [shape = 'f32[1,16,1]{2,1,0:T(8,128)}', space=vmem, size = 0x2000, scoped, tag = 'scratch operand']
  %s0 = inlined_call_operand.hbm [shape: f32[2,16,128], index: 0, kind: input, shape index: {}]
  %s1 = inlined_call_operand.hbm [shape: f32[2,16,16], index: 1, kind: input, shape index: {}]
  %s2 = inlined_call_operand.hbm [shape: f32[128,128], index: 2, kind: input, shape index: {}]
  %s3 = inlined_call_operand.vmem [shape: f32[1,128], index: 3, kind: input, shape index: {}]
  %s4 = inlined_call_operand.hbm [shape: f32[2,16,128], index: 4, kind: output, shape index: {}]
  %s5 = sld [smem:[#allocation0]]
  $region69: #{tpu_custom_call.1} parent=0
    _
  %s7 = ssub.s32 1, %s5
  %s8 = scalar_select 0, %s7, %s5
  $region1: #{tpu_custom_call.1} parent=0
    #allocation4 [shape = 'u8[16384]{0}', space=vmem, size = 0x4000, scoped, tag = 'input window, operand 0']
    #allocation5 [shape = 's32[2]{0}', space=sflag, size = 0x8, scoped, tag = 'scoped memory for tpu_custom_call.1']
    #allocation6 [shape = 's32[2]{0}', space=sflag, size = 0x8, scoped, tag = 'scoped memory for tpu_custom_call.1']
    #allocation7 [shape = 'u8[16384]{0}', space=vmem, size = 0x4000, scoped, tag = 'input window, operand 1']
    #allocation8 [shape = 's32[2]{0}', space=sflag, size = 0x8, scoped, tag = 'scoped memory for tpu_custom_call.1']
    #allocation9 [shape = 'u8[65536]{0}', space=vmem, size = 0x10000, scoped, tag = 'input window, operand 2, single buffered']
    #allocation10 [shape = 'u8[16384]{0}', space=vmem, size = 0x4000, scoped, tag = 'output window, operand 0']
    %9 = vsyncpa [#allocation5], 0
    %s10 = scalar_lea.sflag [#allocation5], 1
    %11 = vsyncpa %s10, 0
    %12 = vsyncpa [#allocation8], 0
    %s13 = scalar_lea.sflag [#allocation8], 1
    %14 = vsyncpa %s13, 0
    %15 = vsyncpa [#allocation6], 0
    %s16 = scalar_lea.sflag [#allocation6], 1
    %17 = vsyncpa %s16, 0
    loop: start=0, step=1, limit=4
    $region2: #{tpu_custom_call.1} parent=1 // loop_pre_header
      _
    $region3: #{tpu_custom_call.1} parent=1 // loop_header
      %s19 = sphi 0, %s23
      %p20 = scmp.ge.s32.totalorder %s19, 4
      %s26 = sphi 0, %s38
      %s27 = sphi 0, %s34
      %s28 = sphi 0, %s26
      %s29 = sphi 0, %s27
      %s30 = sphi 0, %s28
      %s31 = sphi 0, %s29
      %s43 = sphi 0, %s45
      %s46 = sphi 0, %s43
      %s47 = sphi 0, %s46
      %s63 = sphi 0, %s47
      %s71 = sphi 0, %s73
      %s74 = sphi 0, %s71
      %s75 = sphi 0, %s74
      %s91 = sphi 0, %s75
      %s95 = sphi 0, %s95
      %s97 = sphi 0, %s95
      %s98 = sphi 0, %s97
      %s112 = sphi 0, %s98
      %s116 = sphi 0, %s116
      %s118 = sphi 0, %s116
      %s119 = sphi 0, %s118
      %s133 = sphi 0, %s119
      %s139 = sphi 0, %s141
      %s142 = sphi 0, %s139
      %s143 = sphi 0, %s142
      %s159 = sphi 0, %s143
    $region4: #{tpu_custom_call.1} parent=1 // loop_header_branch
      %22 = sbr.rel (%p20) target = $region8
    $region5: #{tpu_custom_call.1} parent=1 // loop_body
      %s24 = ssub.s32 %s19, 1
      %s25 = ssub.s32 %s19, 2
      %s32 = sadd.s32 1, %s27
      %p33 = scmp.ge.s32.totalorder %s32, 1
      %s34 = scalar_select %p33, 0, %s32
      %s35 = sadd.s32 1, %s26
      %s36 = scalar_select %p33, %s35, %s26
      %p37 = scmp.ge.s32.totalorder %s36, 2
      %s38 = scalar_select %p37, 0, %s36
      %s39 = ssub.s32 %s26, %s38
      %s40 = ssub.s32 %s27, %s34
      %s41 = sor.u32 %s39, %s40
      %p42 = scmp.eq.s32.totalorder %s41, 0
      %s44 = sadd.s32 %s43, 1
      %s45 = scalar_select %p42, %s43, %s44
      %p48 = pneg %p42
      %p49 = scmp.eq.s32.totalorder %s19, 1
      %p50 = por %p48, %p49
      %p51 = scmp.ne.s32.totalorder %s43, %s46
      %p52 = scmp.eq.s32.totalorder %s19, 0
      %p53 = por %p51, %p52
      %p54 = scmp.ne.s32.totalorder %s43, %s46
      %p55 = scmp.eq.s32.totalorder %s24, 1
      %p56 = por %p54, %p55
      %p57 = scmp.ne.s32.totalorder %s46, %s47
      %p58 = scmp.eq.s32.totalorder %s24, 0
      %p59 = por %p57, %p58
      %p60 = scmp.ne.s32.totalorder %s46, %s47
      %p61 = scmp.eq.s32.totalorder %s25, 1
      %p62 = por %p60, %p61
      %p64 = scmp.ne.s32.totalorder %s47, %s63
      %p65 = scmp.eq.s32.totalorder %s25, 0
      %p66 = por %p64, %p65
      %s67 = ssub.s32 %s26, %s38
      %s68 = ssub.s32 %s27, %s34
      %s69 = sor.u32 %s67, %s68
      %p70 = scmp.eq.s32.totalorder %s69, 0
      %s72 = sadd.s32 %s71, 1
      %s73 = scalar_select %p70, %s71, %s72
      %p76 = pneg %p70
      %p77 = scmp.eq.s32.totalorder %s19, 1
      %p78 = por %p76, %p77
      %p79 = scmp.ne.s32.totalorder %s71, %s74
      %p80 = scmp.eq.s32.totalorder %s19, 0
      %p81 = por %p79, %p80
      %p82 = scmp.ne.s32.totalorder %s71, %s74
      %p83 = scmp.eq.s32.totalorder %s24, 1
      %p84 = por %p82, %p83
      %p85 = scmp.ne.s32.totalorder %s74, %s75
      %p86 = scmp.eq.s32.totalorder %s24, 0
      %p87 = por %p85, %p86
      %p88 = scmp.ne.s32.totalorder %s74, %s75
      %p89 = scmp.eq.s32.totalorder %s25, 1
      %p90 = por %p88, %p89
      %p92 = scmp.ne.s32.totalorder %s75, %s91
      %p93 = scmp.eq.s32.totalorder %s25, 0
      %p94 = por %p92, %p93
      %s96 = sadd.s32 %s95, 1
      %p99 = scmp.eq.s32.totalorder %s19, 1
      %p100 = scmp.ne.s32.totalorder %s95, %s97
      %p101 = scmp.eq.s32.totalorder %s19, 0
      %p102 = por %p100, %p101
      %p103 = scmp.ne.s32.totalorder %s95, %s97
      %p104 = scmp.eq.s32.totalorder %s24, 1
      %p105 = por %p103, %p104
      %p106 = scmp.ne.s32.totalorder %s97, %s98
      %p107 = scmp.eq.s32.totalorder %s24, 0
      %p108 = por %p106, %p107
      %p109 = scmp.ne.s32.totalorder %s97, %s98
      %p110 = scmp.eq.s32.totalorder %s25, 1
      %p111 = por %p109, %p110
      %p113 = scmp.ne.s32.totalorder %s98, %s112
      %p114 = scmp.eq.s32.totalorder %s25, 0
      %p115 = por %p113, %p114
      %s117 = sadd.s32 %s116, 1
      %p120 = scmp.eq.s32.totalorder %s19, 1
      %p121 = scmp.ne.s32.totalorder %s116, %s118
      %p122 = scmp.eq.s32.totalorder %s19, 0
      %p123 = por %p121, %p122
      %p124 = scmp.ne.s32.totalorder %s116, %s118
      %p125 = scmp.eq.s32.totalorder %s24, 1
      %p126 = por %p124, %p125
      %p127 = scmp.ne.s32.totalorder %s118, %s119
      %p128 = scmp.eq.s32.totalorder %s24, 0
      %p129 = por %p127, %p128
      %p130 = scmp.ne.s32.totalorder %s118, %s119
      %p131 = scmp.eq.s32.totalorder %s25, 1
      %p132 = por %p130, %p131
      %p134 = scmp.ne.s32.totalorder %s119, %s133
      %p135 = scmp.eq.s32.totalorder %s25, 0
      %p136 = por %p134, %p135
      %s137 = ssub.s32 %s26, %s38
      %p138 = scmp.eq.s32.totalorder %s137, 0
      %s140 = sadd.s32 %s139, 1
      %s141 = scalar_select %p138, %s139, %s140
      %p144 = pneg %p138
      %p145 = scmp.eq.s32.totalorder %s19, 1
      %p146 = por %p144, %p145
      %p147 = scmp.ne.s32.totalorder %s139, %s142
      %p148 = scmp.eq.s32.totalorder %s19, 0
      %p149 = por %p147, %p148
      %p150 = scmp.ne.s32.totalorder %s139, %s142
      %p151 = scmp.eq.s32.totalorder %s24, 1
      %p152 = por %p150, %p151
      %p153 = scmp.ne.s32.totalorder %s142, %s143
      %p154 = scmp.eq.s32.totalorder %s24, 0
      %p155 = por %p153, %p154
      %p156 = scmp.ne.s32.totalorder %s142, %s143
      %p157 = scmp.eq.s32.totalorder %s25, 1
      %p158 = por %p156, %p157
      %p160 = scmp.ne.s32.totalorder %s143, %s159
      %p161 = scmp.eq.s32.totalorder %s25, 0
      %p162 = por %p160, %p161
      %p163 = scmp.le.s32.totalorder 1, %s19
      %p164 = scmp.lt.s32.totalorder %s19, 3
      %p165 = pnand %p163, %p164
      %p166 = pneg %p165
      // Predicated region
      $region9: #{tpu_custom_call.1} parent=5 // pred_check
        _
      $region10: #{tpu_custom_call.1} parent=5 // pred_check_branch
        %168 = sbr.rel (%p165) target = $region12
      $region11: #{tpu_custom_call.1} parent=5 // pred_region
        %s169 = ssub.s32 %s19, 1
        // Predicated region
        $region13: #{tpu_custom_call.1} parent=11 // pred_check
          %p170 = pneg %p108
        $region14: #{tpu_custom_call.1} parent=11 // pred_check_branch
          %172 = sbr.rel (%p170) target = $region16
        $region15: #{tpu_custom_call.1} parent=11 // pred_region
          %s174 = ssub.s32 2048, 2048
          %175 = vsyncadd [#allocation8], %s174
          %s176 = sshll.u32 [#allocation9], 4
          %s177 = int_to_ptr.vmem [resolvable:$true] %s176
          %182 = dma.hbm_to_vmem [thread:$0]  %s2, 2048, %s177, [#allocation8], 128, 128, 8
        $region16: #{tpu_custom_call.1} parent=11 // pred_fallthru
          _
        // Predicated region
        $region17: #{tpu_custom_call.1} parent=11 // pred_check
          %p183 = pneg %p129
        $region18: #{tpu_custom_call.1} parent=11 // pred_check_branch
          %185 = sbr.rel (%p183) target = $region20
        $region19: #{tpu_custom_call.1} parent=11 // pred_region
          _
        $region20: #{tpu_custom_call.1} parent=11 // pred_fallthru
          _
      $region12: #{tpu_custom_call.1} parent=5 // pred_fallthru
        _
      %p186 = scmp.lt.s32.totalorder %s19, 2
      // Predicated region
      $region21: #{tpu_custom_call.1} parent=5 // pred_check
        %p187 = pneg %p186
      $region22: #{tpu_custom_call.1} parent=5 // pred_check_branch
        %189 = sbr.rel (%p187) target = $region24
      $region23: #{tpu_custom_call.1} parent=5 // pred_region
        // Predicated region
        $region25: #{tpu_custom_call.1} parent=23 // pred_check
          %p190 = pneg %p53
        $region26: #{tpu_custom_call.1} parent=23 // pred_check_branch
          %192 = sbr.rel (%p190) target = $region28
        $region27: #{tpu_custom_call.1} parent=23 // pred_region
          %s193 = sand.u32 %s43, 1
          %s194 = scalar_lea.sflag [#allocation5], %s193
          %s195 = sand.u32 %s43, 1
          %s196 = smul.addr %s195, 16
          %s197 = scalar_lea.vmem [#allocation4], %s196
          %s198 = smul.u32 2, %s27
          %s200 = ssub.s32 256, 256
          %201 = vsyncadd %s194, %s200
          %s202 = smul.addr %s26, 2
          %s203 = sadd.s32 %s198, %s202
          %s204 = smul.addr %s203, 128
          %s205 = scalar_lea.hbm %s0, %s204
          %s206 = sshll.u32 %s197, 4
          %s207 = int_to_ptr.vmem [resolvable:$true] %s206
          %212 = dma.hbm_to_vmem [thread:$0]  %s205, 256, %s207, %s194, 128, 128, 8
        $region28: #{tpu_custom_call.1} parent=23 // pred_fallthru
          _
        // Predicated region
        $region29: #{tpu_custom_call.1} parent=23 // pred_check
          %p213 = pneg %p81
        $region30: #{tpu_custom_call.1} parent=23 // pred_check_branch
          %215 = sbr.rel (%p213) target = $region32
        $region31: #{tpu_custom_call.1} parent=23 // pred_region
          %s216 = sand.u32 %s19, 1
          %s217 = scalar_lea.sflag [#allocation8], %s216
          %s218 = sand.u32 %s71, 1
          %s219 = smul.addr %s218, 16
          %s220 = scalar_lea.vmem [#allocation7], %s219
          %s222 = ssub.s32 256, 256
          %223 = vsyncadd %s217, %s222
          %s224 = smul.addr %s26, 2
          %s225 = sadd.s32 %s27, %s224
          %s226 = smul.addr %s225, 128
          %s227 = scalar_lea.hbm %s1, %s226
          %s228 = sshll.u32 %s220, 4
          %s229 = int_to_ptr.vmem [resolvable:$true] %s228
          %234 = dma.hbm_to_vmem [thread:$0]  %s227, 256, %s229, %s217, 128, 128, 8
        $region32: #{tpu_custom_call.1} parent=23 // pred_fallthru
          _
      $region24: #{tpu_custom_call.1} parent=5 // pred_fallthru
        _
      %p235 = scmp.le.s32.totalorder 1, %s19
      %p236 = scmp.lt.s32.totalorder %s19, 3
      %p237 = pnand %p235, %p236
      %p238 = pneg %p237
      // Predicated region
      $region33: #{tpu_custom_call.1} parent=5 // pred_check
        _
      $region34: #{tpu_custom_call.1} parent=5 // pred_check_branch
        %240 = sbr.rel (%p237) target = $region36
      $region35: #{tpu_custom_call.1} parent=5 // pred_region
        %s241 = ssub.s32 %s19, 1
        %s242 = sand.u32 %s46, 1
        %s243 = scalar_lea.sflag [#allocation5], %s242
        %s244 = sand.u32 %s46, 1
        %s245 = smul.addr %s244, 16
        %s246 = scalar_lea.vmem [#allocation4], %s245
        // Predicated region
        $region37: #{tpu_custom_call.1} parent=35 // pred_check
          %p247 = pneg %p59
        $region38: #{tpu_custom_call.1} parent=35 // pred_check_branch
          %249 = sbr.rel (%p247) target = $region40
        $region39: #{tpu_custom_call.1} parent=35 // pred_region
          %250 = dma.done %s243, 256
        $region40: #{tpu_custom_call.1} parent=35 // pred_fallthru
          _
        %s251 = sand.u32 %s24, 1
        %s252 = scalar_lea.sflag [#allocation8], %s251
        %s253 = sand.u32 %s74, 1
        %s254 = smul.addr %s253, 16
        %s255 = scalar_lea.vmem [#allocation7], %s254
        // Predicated region
        $region41: #{tpu_custom_call.1} parent=35 // pred_check
          %p256 = pneg %p87
        $region42: #{tpu_custom_call.1} parent=35 // pred_check_branch
          %258 = sbr.rel (%p256) target = $region44
        $region43: #{tpu_custom_call.1} parent=35 // pred_region
          %259 = dma.done %s252, 256
        $region44: #{tpu_custom_call.1} parent=35 // pred_fallthru
          _
        // Predicated region
        $region45: #{tpu_custom_call.1} parent=35 // pred_check
          %p260 = pneg %p108
        $region46: #{tpu_custom_call.1} parent=35 // pred_check_branch
          %262 = sbr.rel (%p260) target = $region48
        $region47: #{tpu_custom_call.1} parent=35 // pred_region
          %263 = dma.done [#allocation8], 2048
        $region48: #{tpu_custom_call.1} parent=35 // pred_fallthru
          _
        %s264 = sand.u32 %s46, 1
        %s265 = scalar_lea.sflag [#allocation5], %s264
        %s266 = sand.u32 %s46, 1
        %s267 = smul.addr %s266, 16
        %s268 = scalar_lea.vmem [#allocation4], %s267
        %p269 = pneg %p59
        %p270 = pneg %p56
        %s271 = sand.u32 %s24, 1
        %s272 = scalar_lea.sflag [#allocation8], %s271
        %s273 = sand.u32 %s74, 1
        %s274 = smul.addr %s273, 16
        %s275 = scalar_lea.vmem [#allocation7], %s274
        %p276 = pneg %p87
        %p277 = pneg %p84
        %p278 = pneg %p108
        %p279 = pneg %p105
        %p280 = pneg %p129
        %p281 = pneg %p126
        %p282 = pneg %p155
        %p283 = pneg %p152
        %s284 = sand.u32 %s142, 1
        %s285 = scalar_lea.sflag [#allocation6], %s284
        %s286 = sand.u32 %s142, 1
        %s287 = smul.addr %s286, 16
        %s288 = scalar_lea.vmem [#allocation10], %s287
        %s289 = smul.u32 2, %s29
        %p290 = scmp.eq.s32.totalorder %s29, 0
        // Predicated region
        $region49: #{tpu_custom_call.1} parent=35 // pred_check
          %p291 = pneg %p290
        $region50: #{tpu_custom_call.1} parent=35 // pred_check_branch
          %293 = sbr.rel (%p291) target = $region52
        $region51: #{tpu_custom_call.1} parent=35 // pred_region
          %294 = vst [vmem:[#allocation2] sm:$0xff] 0.0
          %295 = vst [vmem:[#allocation2 + $0x8] sm:$0xff] 0.0
        $region52: #{tpu_custom_call.1} parent=35 // pred_fallthru
          _
        %v296 = vld [vmem:[%s246] sm:$0xff]
        %v297 = vld [vmem:[%s246 + $0x8] sm:$0xff]
        %v298 = vld [vmem:[#allocation9] sm:$0xff]
        %v299 = vld [vmem:[#allocation9 + $0x8] sm:$0xff]
        %v300 = vld [vmem:[#allocation9 + $0x10] sm:$0xff]
        %v301 = vld [vmem:[#allocation9 + $0x18] sm:$0xff]
        %v302 = vld [vmem:[#allocation9 + $0x20] sm:$0xff]
        %v303 = vld [vmem:[#allocation9 + $0x28] sm:$0xff]
        %v304 = vld [vmem:[#allocation9 + $0x30] sm:$0xff]
        %v305 = vld [vmem:[#allocation9 + $0x38] sm:$0xff]
        %v306 = vld [vmem:[#allocation9 + $0x40] sm:$0xff]
        %v307 = vld [vmem:[#allocation9 + $0x48] sm:$0xff]
        %v308 = vld [vmem:[#allocation9 + $0x50] sm:$0xff]
        %v309 = vld [vmem:[#allocation9 + $0x58] sm:$0xff]
        %v310 = vld [vmem:[#allocation9 + $0x60] sm:$0xff]
        %v311 = vld [vmem:[#allocation9 + $0x68] sm:$0xff]
        %v312 = vld [vmem:[#allocation9 + $0x70] sm:$0xff]
        %v313 = vld [vmem:[#allocation9 + $0x78] sm:$0xff]
        %314 = vmatprep.subr.mxu0 0.0
        %315 = vmatpush1.msra.mxu0 %v298
        %316 = vmatprep.subr.mxu0 0.0
        %317 = vmatpush1.msra.mxu0 %v299
        %318 = vmatprep.subr.mxu0 0.0
        %319 = vmatpush1.msra.mxu0 %v300
        %320 = vmatprep.subr.mxu0 0.0
        %321 = vmatpush1.msra.mxu0 %v301
        %322 = vmatprep.subr.mxu0 0.0
        %323 = vmatpush1.msra.mxu0 %v302
        %324 = vmatprep.subr.mxu0 0.0
        %325 = vmatpush1.msra.mxu0 %v303
        %326 = vmatprep.subr.mxu0 0.0
        %327 = vmatpush1.msra.mxu0 %v304
        %328 = vmatprep.subr.mxu0 0.0
        %329 = vmatpush1.msra.mxu0 %v305
        %330 = vmatprep.subr.mxu0 0.0
        %331 = vmatpush1.msra.mxu0 %v306
        %332 = vmatprep.subr.mxu0 0.0
        %333 = vmatpush1.msra.mxu0 %v307
        %334 = vmatprep.subr.mxu0 0.0
        %335 = vmatpush1.msra.mxu0 %v308
        %336 = vmatprep.subr.mxu0 0.0
        %337 = vmatpush1.msra.mxu0 %v309
        %338 = vmatprep.subr.mxu0 0.0
        %339 = vmatpush1.msra.mxu0 %v310
        %340 = vmatprep.subr.mxu0 0.0
        %341 = vmatpush1.msra.mxu0 %v311
        %342 = vmatprep.subr.mxu0 0.0
        %343 = vmatpush1.msra.mxu0 %v312
        %344 = vmatprep.subr.mxu0 0.0
        %345 = vmatpush1.msra.mxu0 %v313
        %346 = vmatprep.subr.mxu0 0.0
        %347 = vmatpush1.msra.mxu0 0.0
        %348 = vmatprep.subr.mxu0 0.0
        %349 = vmatpush1.msra.mxu0 0.0
        %350 = vmatprep.subr.mxu0 0.0
        %351 = vmatpush1.msra.mxu0 0.0
        %352 = vmatprep.subr.mxu0 0.0
        %353 = vmatpush1.msra.mxu0 0.0
        %354 = vmatprep.subr.mxu0 0.0
        %355 = vmatpush1.msra.mxu0 0.0
        %356 = vmatprep.subr.mxu0 0.0
        %357 = vmatpush1.msra.mxu0 0.0
        %358 = vmatprep.subr.mxu0 0.0
        %359 = vmatpush1.msra.mxu0 0.0
        %360 = vmatprep.subr.mxu0 0.0
        %361 = vmatpush1.msra.mxu0 0.0
        %362 = vmatprep.subr.mxu0 0.0
        %363 = vmatpush1.msra.mxu0 0.0
        %364 = vmatprep.subr.mxu0 0.0
        %365 = vmatpush1.msra.mxu0 0.0
        %366 = vmatprep.subr.mxu0 0.0
        %367 = vmatpush1.msra.mxu0 0.0
        %368 = vmatprep.subr.mxu0 0.0
        %369 = vmatpush1.msra.mxu0 0.0
        %370 = vmatprep.subr.mxu0 0.0
        %371 = vmatpush1.msra.mxu0 0.0
        %372 = vmatprep.subr.mxu0 0.0
        %373 = vmatpush1.msra.mxu0 0.0
        %374 = vmatprep.subr.mxu0 0.0
        %375 = vmatpush1.msra.mxu0 0.0
        %376 = vmatprep.subr.mxu0 0.0
        %377 = vmatpush1.msra.mxu0 0.0
        %378 = vmatprep.mubr.f32.mxu0 0.0
        %379 = vmatmul.mubr.f32.gmra.mrb[0].mxu0 %v296
        %v380 = vpop.f32.mrb[0].mxu0
        %v381 = vadd.f32 0.0, %v380
        %v382 = vpop.f32.mrb[0].mxu0
        %383 = vmatprep.mubr.f32.mxu0 0.0
        %384 = vmatmul.mubr.f32.gmra.mrb[0].mxu0 %v297
        %v385 = vpop.f32.mrb[0].mxu0
        %v386 = vadd.f32 0.0, %v385
        %v387 = vpop.f32.mrb[0].mxu0
        %388 = vdwg.mxu0
        %v389 = vlaneseq
        %v390 = vand.u32 %v389, 127
        %vm391 = vcmp.eq.s32.totalorder %v390, 64
        %v392 = vsel %vm391, 1.0, %v381
        %v393 = vsel %vm391, 1.0, %v386
        %v394 = vld [vmem:[%s255] sm:$0xff]
        %v395 = vld [vmem:[%s255 + $0x8] sm:$0xff]
        %v396 = vld [vmem:[#allocation2] sm:$0xff]
        %v397 = vld [vmem:[#allocation2 + $0x8] sm:$0xff]
        %vm398 = vcmask 130048
        %v400 = vsel %vm398, %v394, 0
        %v403 = vsel %vm398, %v395, 0
        %405 = vmatprep.subr.mxu0 0.0
        %406 = vmatpush1.msra.mxu0 %v392
        %407 = vmatprep.subr.mxu0 0.0
        %408 = vmatpush1.msra.mxu0 %v393
        %409 = vmatprep.subr.mxu0 0.0
        %410 = vmatpush1.msra.mxu0 0.0
        %411 = vmatprep.subr.mxu0 0.0
        %412 = vmatpush1.msra.mxu0 0.0
        %413 = vmatprep.subr.mxu0 0.0
        %414 = vmatpush1.msra.mxu0 0.0
        %415 = vmatprep.subr.mxu0 0.0
        %416 = vmatpush1.msra.mxu0 0.0
        %417 = vmatprep.subr.mxu0 0.0
        %418 = vmatpush1.msra.mxu0 0.0
        %419 = vmatprep.subr.mxu0 0.0
        %420 = vmatpush1.msra.mxu0 0.0
        %421 = vmatprep.subr.mxu0 0.0
        %422 = vmatpush1.msra.mxu0 0.0
        %423 = vmatprep.subr.mxu0 0.0
        %424 = vmatpush1.msra.mxu0 0.0
        %425 = vmatprep.subr.mxu0 0.0
        %426 = vmatpush1.msra.mxu0 0.0
        %427 = vmatprep.subr.mxu0 0.0
        %428 = vmatpush1.msra.mxu0 0.0
        %429 = vmatprep.subr.mxu0 0.0
        %430 = vmatpush1.msra.mxu0 0.0
        %431 = vmatprep.subr.mxu0 0.0
        %432 = vmatpush1.msra.mxu0 0.0
        %433 = vmatprep.subr.mxu0 0.0
        %434 = vmatpush1.msra.mxu0 0.0
        %435 = vmatprep.subr.mxu0 0.0
        %436 = vmatpush1.msra.mxu0 0.0
        %437 = vmatprep.subr.mxu0 0.0
        %438 = vmatpush1.msra.mxu0 0.0
        %439 = vmatprep.subr.mxu0 0.0
        %440 = vmatpush1.msra.mxu0 0.0
        %441 = vmatprep.subr.mxu0 0.0
        %442 = vmatpush1.msra.mxu0 0.0
        %443 = vmatprep.subr.mxu0 0.0
        %444 = vmatpush1.msra.mxu0 0.0
        %445 = vmatprep.subr.mxu0 0.0
        %446 = vmatpush1.msra.mxu0 0.0
        %447 = vmatprep.subr.mxu0 0.0
        %448 = vmatpush1.msra.mxu0 0.0
        %449 = vmatprep.subr.mxu0 0.0
        %450 = vmatpush1.msra.mxu0 0.0
        %451 = vmatprep.subr.mxu0 0.0
        %452 = vmatpush1.msra.mxu0 0.0
        %453 = vmatprep.subr.mxu0 0.0
        %454 = vmatpush1.msra.mxu0 0.0
        %455 = vmatprep.subr.mxu0 0.0
        %456 = vmatpush1.msra.mxu0 0.0
        %457 = vmatprep.subr.mxu0 0.0
        %458 = vmatpush1.msra.mxu0 0.0
        %459 = vmatprep.subr.mxu0 0.0
        %460 = vmatpush1.msra.mxu0 0.0
        %461 = vmatprep.subr.mxu0 0.0
        %462 = vmatpush1.msra.mxu0 0.0
        %463 = vmatprep.subr.mxu0 0.0
        %464 = vmatpush1.msra.mxu0 0.0
        %465 = vmatprep.subr.mxu0 0.0
        %466 = vmatpush1.msra.mxu0 0.0
        %467 = vmatprep.subr.mxu0 0.0
        %468 = vmatpush1.msra.mxu0 0.0
        %469 = vmatprep.mubr.f32.mxu0 0.0
        %470 = vmatmul.mubr.f32.gmra.mrb[0].mxu0 %v400
        %v471 = vpop.f32.mrb[0].mxu0
        %v472 = vadd.f32 0.0, %v471
        %v473 = vpop.f32.mrb[0].mxu0
        %474 = vmatprep.mubr.f32.mxu0 0.0
        %475 = vmatmul.mubr.f32.gmra.mrb[0].mxu0 %v403
        %v476 = vpop.f32.mrb[0].mxu0
        %v477 = vadd.f32 0.0, %v476
        %v478 = vpop.f32.mrb[0].mxu0
        %479 = vdwg.mxu0
        %v480 = vadd.f32 %v396, %v472
        %v481 = vadd.f32 %v397, %v477
        %482 = vst [vmem:[#allocation2] sm:$0xff] %v480
        %483 = vst [vmem:[#allocation2 + $0x8] sm:$0xff] %v481
        // Predicated region
        $region53: #{tpu_custom_call.1} parent=35 // pred_check
          %p484 = pneg %p290
        $region54: #{tpu_custom_call.1} parent=35 // pred_check_branch
          %486 = sbr.rel (%p484) target = $region56
        $region55: #{tpu_custom_call.1} parent=35 // pred_region
          %v487 = vld [vmem:[#allocation2] sm:$0xff]
          %v488 = vld [vmem:[#allocation2 + $0x8] sm:$0xff]
          %v489 = vsel %vm391, %v487, 0.0
          %v490 = vsel %vm391, %v488, 0.0
          %491 = vadd.xlane.f32.xlu0 %v489
          %v492 = vpop.xlane.xlu0 %491
          %493 = vadd.xlane.f32.xlu0 %v490
          %v494 = vpop.xlane.xlu0 %493
          %v495 = vadd.f32 %v492, 1.0
          %v496 = vadd.f32 %v494, 1.0
          %v497 = vrcp.pop %v495
          %v498 = vrcp.pop %v496
          %v499 = vmul.f32 %v495, %v497
          %v500 = vmul.f32 %v496, %v498
          %v501 = vsub.f32 2.0, %v499
          %v502 = vsub.f32 2.0, %v500
          %v503 = vmul.f32 %v497, %v501
          %v504 = vmul.f32 %v498, %v502
          %v505 = vmul.f32 %v487, %v503
          %v506 = vmul.f32 %v488, %v504
          %v507 = vld [vmem:[%s3] sm:$0x1]
          %v509 = vlaneseq
          %v510 = vshrl.u32 %v509, 7
          %v511 = vsub.s32 0, %v510
          %v512 = vrot.slane %v507, %v511
          %v514 = vadd.f32 %v505, %v512
          %v515 = vadd.f32 %v506, %v512
          %516 = vst [vmem:[%s288] sm:$0xff] %v514
          %517 = vst [vmem:[%s288 + $0x8] sm:$0xff] %v515
        $region56: #{tpu_custom_call.1} parent=35 // pred_fallthru
          _
        %s518 = sand.u32 %s142, 1
        %s519 = scalar_lea.sflag [#allocation6], %s518
        %s520 = sand.u32 %s142, 1
        %s521 = smul.addr %s520, 16
        %s522 = scalar_lea.vmem [#allocation10], %s521
        // Predicated region
        $region57: #{tpu_custom_call.1} parent=35 // pred_check
          %p523 = pneg %p152
        $region58: #{tpu_custom_call.1} parent=35 // pred_check_branch
          %525 = sbr.rel (%p523) target = $region60
        $region59: #{tpu_custom_call.1} parent=35 // pred_region
          %s527 = ssub.s32 256, 256
          %528 = vsyncadd %s519, %s527
          %s529 = smul.addr %s28, 2
          %s530 = smul.addr %s529, 128
          %s531 = scalar_lea.hbm %s4, %s530
          %s532 = sshll.u32 %s522, 4
          %s533 = int_to_ptr.vmem [resolvable:$true] %s532
          %538 = dma.vmem_to_hbm [thread:$0]  %s533, 256, %s531, %s519, 128, 128, 8
        $region60: #{tpu_custom_call.1} parent=35 // pred_fallthru
          _
      $region36: #{tpu_custom_call.1} parent=5 // pred_fallthru
        _
      %p539 = scmp.le.s32.totalorder 2, %s19
      // Predicated region
      $region61: #{tpu_custom_call.1} parent=5 // pred_check
        %p540 = pneg %p539
      $region62: #{tpu_custom_call.1} parent=5 // pred_check_branch
        %542 = sbr.rel (%p540) target = $region64
      $region63: #{tpu_custom_call.1} parent=5 // pred_region
        %s543 = ssub.s32 %s19, 2
        // Predicated region
        $region65: #{tpu_custom_call.1} parent=63 // pred_check
          %p544 = pneg %p158
        $region66: #{tpu_custom_call.1} parent=63 // pred_check_branch
          %546 = sbr.rel (%p544) target = $region68
        $region67: #{tpu_custom_call.1} parent=63 // pred_region
          %s547 = sand.u32 %s143, 1
          %s548 = scalar_lea.sflag [#allocation6], %s547
          %s549 = sand.u32 %s143, 1
          %s550 = smul.addr %s549, 16
          %s551 = scalar_lea.vmem [#allocation10], %s550
          %552 = dma.done %s548, 256
        $region68: #{tpu_custom_call.1} parent=63 // pred_fallthru
          _
      $region64: #{tpu_custom_call.1} parent=5 // pred_fallthru
        _
    $region6: #{tpu_custom_call.1} parent=1 // loop_footer
      %s23 = sadd.s32 1, %s19
    $region7: #{tpu_custom_call.1} parent=1 // loop_footer_branch
      %18 = sbr.rel target = $region3
    $region8: #{tpu_custom_call.1} parent=1 // loop_exit
      _
    %553 = vsyncpa [#allocation5], 1
    %s554 = scalar_lea.sflag [#allocation5], 1
    %555 = vsyncpa %s554, 1
    %556 = vsyncpa [#allocation8], 1
    %s557 = scalar_lea.sflag [#allocation8], 1
    %558 = vsyncpa %s557, 1
    %559 = vsyncpa [#allocation6], 1
    %s560 = scalar_lea.sflag [#allocation6], 1
    %561 = vsyncpa %s560, 1

</llo_original>
